<compile_context>
chip_gen: v5e
topology: v5e:2x2
jax: 0.10.0
libtpu: 0.0.40
codegen_flags: <defaults>
</compile_context>

<pallas_src>
import functools

import jax
import jax.numpy as jnp
from jax import lax
from jax.experimental import pallas as pl
from jax.experimental.pallas import tpu as pltpu


def _round_up(n, m):
    return ((n + m - 1) // m) * m


def _critic_kernel(mxu_dtype, x_ref,
                   w1_ref, b1_ref,
                   w2_ref, b2_ref,
                   w3_ref, b3_ref,
                   w4_ref, b4_ref,
                   out_ref):
    """One batch tile: 3 MXU matmuls (f32 acc) + f32 bias/ReLU + lane-dense final proj."""
    # In-kernel cast to the MXU dtype (VPU is idle-ish here; avoids an extra HBM pass).
    x = x_ref[...].astype(mxu_dtype)

    h = jnp.dot(x, w1_ref[...], preferred_element_type=jnp.float32)
    h = jnp.maximum(h + b1_ref[...], 0.0)

    h = jnp.dot(h.astype(mxu_dtype), w2_ref[...], preferred_element_type=jnp.float32)
    h = jnp.maximum(h + b2_ref[...], 0.0)

    h = jnp.dot(h.astype(mxu_dtype), w3_ref[...], preferred_element_type=jnp.float32)
    h = jnp.maximum(h + b3_ref[...], 0.0)                       # (TB, 16) f32

    # Final 16 -> 1 projection: contract the feature dim of *both* operands so the MXU
    # emits a lane-dense (1, TB) row directly (no sublane->lane XLU relayout, no masked
    # (TB, 1) stores).  f32 inputs; K=16 so the cost is negligible.
    row = lax.dot_general(
        w4_ref[...], h,                                        # (1, 16) x (TB, 16)
        dimension_numbers=(((1,), (1,)), ((), ())),
        preferred_element_type=jnp.float32)                    # -> (1, TB)
    row = row + b4_ref[...]
    out_ref[...] = row.reshape(out_ref.shape).astype(out_ref.dtype)


def critic_forward(x, params, *, tile_b=2048, mxu_dtype=jnp.bfloat16):
    """x: (B, input_dim) f32.  params: (in, out) weights and (1, out) biases.

    Returns the critic value, shape (B, 1) float32.
    """
    B, D = x.shape

    # Batch tile selection:
    #   * tiny B (<= 128): one small sublane-aligned tile (pad at most 7 rows).
    #   * large B: big tile (multiple of 128) for low per-step overhead, capped so
    #     num_tiles >= 2 (megacore sharding on v7x via dimension_semantics).
    if B <= 128:
        tb = _round_up(max(B, 8), 8)
    else:
        tb = max(128, min(_round_up(tile_b, 128), _round_up(pl.cdiv(B, 2), 128)))
    num_tiles = pl.cdiv(B, tb)

    if B < tb:  # only possible on the tiny-B path; pads < 8 rows
        x = jnp.pad(x, ((0, tb - B), (0, 0)))
    # For B >= tb the ragged last tile is handled by the grid: out-of-range rows read
    # garbage, produce row-independent garbage values, and are sliced off by [:B].

    # Weights for layers 1-3 in the MXU dtype (tiny, cast once in the wrapper);
    # biases and the final projection stay f32 for the VPU / f32 final dot.
    w1 = params["w1"].astype(mxu_dtype)
    w2 = params["w2"].astype(mxu_dtype)
    w3 = params["w3"].astype(mxu_dtype)
    b1 = params["b1"].astype(jnp.float32)
    b2 = params["b2"].astype(jnp.float32)
    b3 = params["b3"].astype(jnp.float32)
    w4 = params["w4"].reshape(1, 16).astype(jnp.float32)
    b4 = params["b4"].reshape(1, 1).astype(jnp.float32)

    itemsize = jnp.dtype(mxu_dtype).itemsize
    n_rows = num_tiles * tb
    weight_bytes = ((w1.size + w2.size + w3.size) * itemsize
                    + (b1.size + b2.size + b3.size + w4.size + b4.size) * 4)
    cost = pl.CostEstimate(
        flops=2 * n_rows * (D * 64 + 64 * 32 + 32 * 16 + 16 * 1),
        transcendentals=0,
        bytes_accessed=B * D * 4 + B * 4 + weight_bytes,
    )

    kernel = functools.partial(_critic_kernel, mxu_dtype)

    out = pl.pallas_call(
        kernel,
        out_shape=jax.ShapeDtypeStruct((num_tiles, 1, tb), jnp.float32),
        grid=(num_tiles,),
        in_specs=[
            # activation tile: f32, pipelined (double-buffered) across the batch grid
            pl.BlockSpec((tb, D), lambda i: (i, 0)),
            # weights / biases: full-extent, constant block index -> stay VMEM-resident
            pl.BlockSpec((D, 64), lambda i: (0, 0)),
            pl.BlockSpec((1, 64), lambda i: (0, 0)),
            pl.BlockSpec((64, 32), lambda i: (0, 0)),
            pl.BlockSpec((1, 32), lambda i: (0, 0)),
            pl.BlockSpec((32, 16), lambda i: (0, 0)),
            pl.BlockSpec((1, 16), lambda i: (0, 0)),
            pl.BlockSpec((1, 16), lambda i: (0, 0)),   # w4 as a (1, 16) row, f32
            pl.BlockSpec((1, 1), lambda i: (0, 0)),    # b4 scalar, f32
        ],
        # lane-dense output row per tile (last dim = tb)
        out_specs=pl.BlockSpec((1, 1, tb), lambda i: (i, 0, 0)),
        compiler_params=pltpu.CompilerParams(
            dimension_semantics=("parallel",),   # shard batch tiles across TCs on v7x
        ),
        cost_estimate=cost,
    )(x, w1, b1, w2, b2, w3, b3, w4, b4)

    return out.reshape(n_rows, 1)[:B]


def init_params(key, input_dim):
    """Deterministic PyTorch-style init: U(-1/sqrt(fan_in), 1/sqrt(fan_in))."""
    dims = [(input_dim, 64), (64, 32), (32, 16), (16, 1)]
    params = {}
    keys = jax.random.split(key, 2 * len(dims))
    for i, (fin, fout) in enumerate(dims):
        bound = 1.0 / jnp.sqrt(jnp.float32(fin))
        w = jax.random.uniform(keys[2 * i], (fin, fout), jnp.float32, -bound, bound)
        b = jax.random.uniform(keys[2 * i + 1], (1, fout), jnp.float32, -bound, bound)
        params[f"w{i + 1}"] = w
        params[f"b{i + 1}"] = b
    return params


def critic_reference_bf16(x, params, mxu_dtype=jnp.bfloat16):
    """Reference with the same bf16-on-MXU / f32-accumulate numerics as the kernel."""
    c = lambda a: a.astype(mxu_dtype)
    h = jnp.maximum(jnp.dot(c(x), c(params["w1"]),
                            preferred_element_type=jnp.float32) + params["b1"], 0.0)
    h = jnp.maximum(jnp.dot(c(h), c(params["w2"]),
                            preferred_element_type=jnp.float32) + params["b2"], 0.0)
    h = jnp.maximum(jnp.dot(c(h), c(params["w3"]),
                            preferred_element_type=jnp.float32) + params["b3"], 0.0)
    return jnp.dot(h, params["w4"]) + params["b4"]


def critic_reference_f32(x, params):
    """Original PyTorch-module (full f32) semantics."""
    h = jnp.maximum(x @ params["w1"] + params["b1"], 0.0)
    h = jnp.maximum(h @ params["w2"] + params["b2"], 0.0)
    h = jnp.maximum(h @ params["w3"] + params["b3"], 0.0)
    return h @ params["w4"] + params["b4"]


if __name__ == "__main__":
    key = jax.random.PRNGKey(0)
    k_params, k_x, k_x2 = jax.random.split(key, 3)

    input_dim = 32  # small RL state vector

    params = init_params(k_params, input_dim)

    # --- small-batch case (single tiny tile) -----------------------------------
    batch = 8
    x = jax.random.normal(k_x, (batch, input_dim), dtype=jnp.float32)
    v = jax.block_until_ready(critic_forward(x, params))
    assert v.shape == (batch, 1)

    v_bf16_ref = critic_reference_bf16(x, params)
    assert jnp.allclose(v, v_bf16_ref, atol=1e-3, rtol=1e-3), "mismatch vs bf16 reference"
    v_f32_ref = critic_reference_f32(x, params)
    assert jnp.allclose(v, v_f32_ref, atol=5e-2, rtol=5e-2), "mismatch vs f32 reference"

    # --- multi-tile / ragged-last-tile case (no wrapper pad) --------------------
    batch2 = 200  # > 128 -> two 128-row tiles, second tile ragged
    x2 = jax.random.normal(k_x2, (batch2, input_dim), dtype=jnp.float32)
    v2 = jax.block_until_ready(critic_forward(x2, params))
    assert v2.shape == (batch2, 1)
    v2_ref = critic_reference_bf16(x2, params)
    assert jnp.allclose(v2, v2_ref, atol=1e-3, rtol=1e-3), "mismatch vs bf16 reference (ragged)"

    print("KERNEL_OK")
</pallas_src>

<mosaic_0001>
module attributes {stable_mosaic.version = 11 : i64} {
  func.func @_critic_kernel(%arg0: i32, %arg1: memref<8x32xf32, #tpu.memory_space<vmem>>, %arg2: memref<32x64xbf16, #tpu.memory_space<vmem>>, %arg3: memref<1x64xf32, #tpu.memory_space<vmem>>, %arg4: memref<64x32xbf16, #tpu.memory_space<vmem>>, %arg5: memref<1x32xf32, #tpu.memory_space<vmem>>, %arg6: memref<32x16xbf16, #tpu.memory_space<vmem>>, %arg7: memref<1x16xf32, #tpu.memory_space<vmem>>, %arg8: memref<1x16xf32, #tpu.memory_space<vmem>>, %arg9: memref<1x1xf32, #tpu.memory_space<vmem>>, %arg10: memref<1x1x8xf32, #tpu.memory_space<vmem>>) attributes {dimension_semantics = [#tpu.dimension_semantics<parallel>], iteration_bounds = array<i64: 1>, scalar_prefetch = 0 : i64, scratch_operands = 0 : i64, tpu.core_type = #tpu.core_type<tc>, window_params = [{transform_indices = @transform_0, window_bounds = array<i64: 8, 32>}, {pipeline_mode = #tpu.pipeline_mode<synchronous>, transform_indices = @transform_1, window_bounds = array<i64: 32, 64>}, {pipeline_mode = #tpu.pipeline_mode<synchronous>, transform_indices = @transform_2, window_bounds = array<i64: 1, 64>}, {pipeline_mode = #tpu.pipeline_mode<synchronous>, transform_indices = @transform_3, window_bounds = array<i64: 64, 32>}, {pipeline_mode = #tpu.pipeline_mode<synchronous>, transform_indices = @transform_4, window_bounds = array<i64: 1, 32>}, {pipeline_mode = #tpu.pipeline_mode<synchronous>, transform_indices = @transform_5, window_bounds = array<i64: 32, 16>}, {pipeline_mode = #tpu.pipeline_mode<synchronous>, transform_indices = @transform_6, window_bounds = array<i64: 1, 16>}, {pipeline_mode = #tpu.pipeline_mode<synchronous>, transform_indices = @transform_7, window_bounds = array<i64: 1, 16>}, {pipeline_mode = #tpu.pipeline_mode<synchronous>, transform_indices = @transform_8, window_bounds = array<i64: 1, 1>}, {transform_indices = @transform_9, window_bounds = array<i64: 1, 1, 8>}]} {
    %c0 = arith.constant 0 : index
    %c0_0 = arith.constant 0 : index
    %0 = vector.load %arg1[%c0, %c0_0] : memref<8x32xf32, #tpu.memory_space<vmem>>, vector<8x32xf32>
    %1 = arith.truncf %0 : vector<8x32xf32> to vector<8x32xbf16>
    %c0_1 = arith.constant 0 : index
    %c0_2 = arith.constant 0 : index
    %2 = vector.load %arg2[%c0_1, %c0_2] : memref<32x64xbf16, #tpu.memory_space<vmem>>, vector<32x64xbf16>
    %cst = arith.constant dense<0.000000e+00> : vector<8x64xf32>
    %3 = tpu.matmul %1, %2, %cst {dimension_numbers = #tpu.dot_dimension_numbers<[1], [0], [0], [1], [0, 0, 1, 1], [], []>} : vector<8x32xbf16>, vector<32x64xbf16>, vector<8x64xf32> -> vector<8x64xf32>
    %c0_3 = arith.constant 0 : index
    %c0_4 = arith.constant 0 : index
    %4 = vector.load %arg3[%c0_3, %c0_4] : memref<1x64xf32, #tpu.memory_space<vmem>>, vector<1x64xf32>
    %5 = vector.broadcast %4 : vector<1x64xf32> to vector<8x64xf32>
    %6 = arith.addf %3, %5 : vector<8x64xf32>
    %cst_5 = arith.constant 0.000000e+00 : f32
    %7 = vector.broadcast %cst_5 : f32 to vector<8x64xf32>
    %8 = arith.maximumf %6, %7 : vector<8x64xf32>
    %9 = arith.truncf %8 : vector<8x64xf32> to vector<8x64xbf16>
    %c0_6 = arith.constant 0 : index
    %c0_7 = arith.constant 0 : index
    %10 = vector.load %arg4[%c0_6, %c0_7] : memref<64x32xbf16, #tpu.memory_space<vmem>>, vector<64x32xbf16>
    %cst_8 = arith.constant dense<0.000000e+00> : vector<8x32xf32>
    %11 = tpu.matmul %9, %10, %cst_8 {dimension_numbers = #tpu.dot_dimension_numbers<[1], [0], [0], [1], [0, 0, 1, 1], [], []>} : vector<8x64xbf16>, vector<64x32xbf16>, vector<8x32xf32> -> vector<8x32xf32>
    %c0_9 = arith.constant 0 : index
    %c0_10 = arith.constant 0 : index
    %12 = vector.load %arg5[%c0_9, %c0_10] : memref<1x32xf32, #tpu.memory_space<vmem>>, vector<1x32xf32>
    %13 = vector.broadcast %12 : vector<1x32xf32> to vector<8x32xf32>
    %14 = arith.addf %11, %13 : vector<8x32xf32>
    %cst_11 = arith.constant 0.000000e+00 : f32
    %15 = vector.broadcast %cst_11 : f32 to vector<8x32xf32>
    %16 = arith.maximumf %14, %15 : vector<8x32xf32>
    %17 = arith.truncf %16 : vector<8x32xf32> to vector<8x32xbf16>
    %c0_12 = arith.constant 0 : index
    %c0_13 = arith.constant 0 : index
    %18 = vector.load %arg6[%c0_12, %c0_13] : memref<32x16xbf16, #tpu.memory_space<vmem>>, vector<32x16xbf16>
    %cst_14 = arith.constant dense<0.000000e+00> : vector<8x16xf32>
    %19 = tpu.matmul %17, %18, %cst_14 {dimension_numbers = #tpu.dot_dimension_numbers<[1], [0], [0], [1], [0, 0, 1, 1], [], []>} : vector<8x32xbf16>, vector<32x16xbf16>, vector<8x16xf32> -> vector<8x16xf32>
    %c0_15 = arith.constant 0 : index
    %c0_16 = arith.constant 0 : index
    %20 = vector.load %arg7[%c0_15, %c0_16] : memref<1x16xf32, #tpu.memory_space<vmem>>, vector<1x16xf32>
    %21 = vector.broadcast %20 : vector<1x16xf32> to vector<8x16xf32>
    %22 = arith.addf %19, %21 : vector<8x16xf32>
    %cst_17 = arith.constant 0.000000e+00 : f32
    %23 = vector.broadcast %cst_17 : f32 to vector<8x16xf32>
    %24 = arith.maximumf %22, %23 : vector<8x16xf32>
    %c0_18 = arith.constant 0 : index
    %c0_19 = arith.constant 0 : index
    %25 = vector.load %arg8[%c0_18, %c0_19] : memref<1x16xf32, #tpu.memory_space<vmem>>, vector<1x16xf32>
    %cst_20 = arith.constant dense<0.000000e+00> : vector<1x8xf32>
    %26 = tpu.matmul %25, %24, %cst_20 {dimension_numbers = #tpu.dot_dimension_numbers<[1], [1], [0], [0], [0, 0, 1, 0], [], []>} : vector<1x16xf32>, vector<8x16xf32>, vector<1x8xf32> -> vector<1x8xf32>
    %c0_21 = arith.constant 0 : index
    %c0_22 = arith.constant 0 : index
    %27 = vector.load %arg9[%c0_21, %c0_22] : memref<1x1xf32, #tpu.memory_space<vmem>>, vector<1x1xf32>
    %28 = vector.broadcast %27 : vector<1x1xf32> to vector<1x8xf32>
    %29 = arith.addf %26, %28 : vector<1x8xf32>
    %30 = vector.shape_cast %29 : vector<1x8xf32> to vector<1x1x8xf32>
    %c0_23 = arith.constant 0 : index
    %c0_24 = arith.constant 0 : index
    %c0_25 = arith.constant 0 : index
    %31 = vector.load %arg10[%c0_23, %c0_24, %c0_25] : memref<1x1x8xf32, #tpu.memory_space<vmem>>, vector<1x1x8xf32>
    tpu.vector_store %arg10[%c0_23, %c0_24, %c0_25], %30 {strides = array<i32>} : memref<1x1x8xf32, #tpu.memory_space<vmem>>, vector<1x1x8xf32>,
    return
  }
  func.func @transform_0(%arg0: i32) -> (i32, i32) {
    %c0_i32 = arith.constant 0 : i32
    %c0_i32_0 = arith.constant 0 : i32
    return %arg0, %c0_i32 : i32, i32
  }
  func.func @transform_1(%arg0: i32) -> (i32, i32) {
    %c0_i32 = arith.constant 0 : i32
    %c0_i32_0 = arith.constant 0 : i32
    %c0_i32_1 = arith.constant 0 : i32
    return %c0_i32, %c0_i32_0 : i32, i32
  }
  func.func @transform_2(%arg0: i32) -> (i32, i32) {
    %c0_i32 = arith.constant 0 : i32
    %c0_i32_0 = arith.constant 0 : i32
    %c0_i32_1 = arith.constant 0 : i32
    return %c0_i32, %c0_i32_0 : i32, i32
  }
  func.func @transform_3(%arg0: i32) -> (i32, i32) {
    %c0_i32 = arith.constant 0 : i32
    %c0_i32_0 = arith.constant 0 : i32
    %c0_i32_1 = arith.constant 0 : i32
    return %c0_i32, %c0_i32_0 : i32, i32
  }
  func.func @transform_4(%arg0: i32) -> (i32, i32) {
    %c0_i32 = arith.constant 0 : i32
    %c0_i32_0 = arith.constant 0 : i32
    %c0_i32_1 = arith.constant 0 : i32
    return %c0_i32, %c0_i32_0 : i32, i32
  }
  func.func @transform_5(%arg0: i32) -> (i32, i32) {
    %c0_i32 = arith.constant 0 : i32
    %c0_i32_0 = arith.constant 0 : i32
    %c0_i32_1 = arith.constant 0 : i32
    return %c0_i32, %c0_i32_0 : i32, i32
  }
  func.func @transform_6(%arg0: i32) -> (i32, i32) {
    %c0_i32 = arith.constant 0 : i32
    %c0_i32_0 = arith.constant 0 : i32
    %c0_i32_1 = arith.constant 0 : i32
    return %c0_i32, %c0_i32_0 : i32, i32
  }
  func.func @transform_7(%arg0: i32) -> (i32, i32) {
    %c0_i32 = arith.constant 0 : i32
    %c0_i32_0 = arith.constant 0 : i32
    %c0_i32_1 = arith.constant 0 : i32
    return %c0_i32, %c0_i32_0 : i32, i32
  }
  func.func @transform_8(%arg0: i32) -> (i32, i32) {
    %c0_i32 = arith.constant 0 : i32
    %c0_i32_0 = arith.constant 0 : i32
    %c0_i32_1 = arith.constant 0 : i32
    return %c0_i32, %c0_i32_0 : i32, i32
  }
  func.func @transform_9(%arg0: i32) -> (i32, i32, i32) {
    %c0_i32 = arith.constant 0 : i32
    %c0_i32_0 = arith.constant 0 : i32
    %c0_i32_1 = arith.constant 0 : i32
    return %arg0, %c0_i32, %c0_i32_0 : i32, i32, i32
  }
}

</mosaic_0001>

<llo_original>
// kernel: tpu_custom_call.1
$region0: #{tpu_custom_call.1}
  #allocation0 [shape = 'u32[]', space=smem, size = 0x4, offset = 0x4, fixed_abs, tag = 'smem constant byte address 0x4 - core index']
  #allocation1 [shape = 'u32[72,128]{1,0:T(1,128)}', space=vmem, size = 0x9000, scoped, tag = 'internal scratch']
  #allocation2 [shape = 'f32[1,1]{1,0:T(1,128)S(1)}', space=vmem, size = 0x200, scoped, tag = 'scoped memory for tpu_custom_call.1']
  %s0 = inlined_call_operand.vmem [shape: f32[8,32], index: 0, kind: input, shape index: {}]
  %s1 = inlined_call_operand.vmem [shape: bf16[32,64], index: 1, kind: input, shape index: {}]
  %s2 = inlined_call_operand.vmem [shape: f32[1,64], index: 2, kind: input, shape index: {}]
  %s3 = inlined_call_operand.vmem [shape: bf16[64,32], index: 3, kind: input, shape index: {}]
  %s4 = inlined_call_operand.vmem [shape: f32[1,32], index: 4, kind: input, shape index: {}]
  %s5 = inlined_call_operand.vmem [shape: bf16[32,16], index: 5, kind: input, shape index: {}]
  %s6 = inlined_call_operand.vmem [shape: f32[1,16], index: 6, kind: input, shape index: {}]
  %s7 = inlined_call_operand.vmem [shape: f32[1,16], index: 7, kind: input, shape index: {}]
  %s8 = inlined_call_operand.<no memory space> [shape: f32[1,1], index: 8, kind: input, shape index: {}]
  %s9 = inlined_call_operand.hbm [shape: f32[1,1,8], index: 9, kind: output, shape index: {}]
  %s10 = sld [smem:[#allocation0]]
  $region46: #{tpu_custom_call.1} parent=0
    _
  %s12 = ssub.s32 1, %s10
  %s13 = scalar_select 0, %s12, %s10
  %v14 = vstv %s8
  %15 = vst [vmem:[#allocation2] sm:$0x1] %v14
  $region1: #{tpu_custom_call.1} parent=0
    #allocation3 [shape = 'u8[512]{0}', space=vmem, size = 0x400, scoped, tag = 'output window, operand 0, single buffered']
    #allocation4 [shape = 's32[1]{0}', space=sflag, size = 0x4, scoped, tag = 'scoped memory for tpu_custom_call.1']
    %16 = vsyncpa [#allocation4], 0
    // Predicated region
    $region2: #{tpu_custom_call.1} parent=1 // pred_check
      _
    $region3: #{tpu_custom_call.1} parent=1 // pred_check_branch
      %18 = sbr.rel (0) target = $region5
    $region4: #{tpu_custom_call.1} parent=1 // pred_region
      _
    $region5: #{tpu_custom_call.1} parent=1 // pred_fallthru
      _
    // Predicated region
    $region6: #{tpu_custom_call.1} parent=1 // pred_check
      _
    $region7: #{tpu_custom_call.1} parent=1 // pred_check_branch
      %20 = sbr.rel (0) target = $region9
    $region8: #{tpu_custom_call.1} parent=1 // pred_region
      _
    $region9: #{tpu_custom_call.1} parent=1 // pred_fallthru
      _
    // Predicated region
    $region10: #{tpu_custom_call.1} parent=1 // pred_check
      _
    $region11: #{tpu_custom_call.1} parent=1 // pred_check_branch
      %22 = sbr.rel (0) target = $region13
    $region12: #{tpu_custom_call.1} parent=1 // pred_region
      _
    $region13: #{tpu_custom_call.1} parent=1 // pred_fallthru
      _
    // Predicated region
    $region14: #{tpu_custom_call.1} parent=1 // pred_check
      _
    $region15: #{tpu_custom_call.1} parent=1 // pred_check_branch
      %24 = sbr.rel (0) target = $region17
    $region16: #{tpu_custom_call.1} parent=1 // pred_region
      _
    $region17: #{tpu_custom_call.1} parent=1 // pred_fallthru
      _
    // Predicated region
    $region18: #{tpu_custom_call.1} parent=1 // pred_check
      _
    $region19: #{tpu_custom_call.1} parent=1 // pred_check_branch
      %26 = sbr.rel (0) target = $region21
    $region20: #{tpu_custom_call.1} parent=1 // pred_region
      _
    $region21: #{tpu_custom_call.1} parent=1 // pred_fallthru
      _
    // Predicated region
    $region22: #{tpu_custom_call.1} parent=1 // pred_check
      _
    $region23: #{tpu_custom_call.1} parent=1 // pred_check_branch
      %28 = sbr.rel (0) target = $region25
    $region24: #{tpu_custom_call.1} parent=1 // pred_region
      _
    $region25: #{tpu_custom_call.1} parent=1 // pred_fallthru
      _
    // Predicated region
    $region26: #{tpu_custom_call.1} parent=1 // pred_check
      _
    $region27: #{tpu_custom_call.1} parent=1 // pred_check_branch
      %30 = sbr.rel (0) target = $region29
    $region28: #{tpu_custom_call.1} parent=1 // pred_region
      _
    $region29: #{tpu_custom_call.1} parent=1 // pred_fallthru
      _
    // Predicated region
    $region30: #{tpu_custom_call.1} parent=1 // pred_check
      _
    $region31: #{tpu_custom_call.1} parent=1 // pred_check_branch
      %32 = sbr.rel (0) target = $region33
    $region32: #{tpu_custom_call.1} parent=1 // pred_region
      _
    $region33: #{tpu_custom_call.1} parent=1 // pred_fallthru
      _
    // Predicated region
    $region34: #{tpu_custom_call.1} parent=1 // pred_check
      _
    $region35: #{tpu_custom_call.1} parent=1 // pred_check_branch
      %34 = sbr.rel (0) target = $region37
    $region36: #{tpu_custom_call.1} parent=1 // pred_region
      _
    $region37: #{tpu_custom_call.1} parent=1 // pred_fallthru
      _
    %v36 = vld [vmem:[%s0] sm:$0xff]
    %v37 = vpack.c.bf16 %v36, %v36
    %v38 = vld [vmem:[%s1] sm:$0xf]
    %v39 = vld [vmem:[%s1 + $0x4] sm:$0xf]
    %v40 = vld [vmem:[%s1 + $0x8] sm:$0xf]
    %v41 = vld [vmem:[%s1 + $0xc] sm:$0xf]
    %v42 = vld [vmem:[%s2] sm:$0x1]
    %v44 = vperm.slane %v42, 0
    %v50 = vunpack.c.l.b16 %v38
    %v51 = vunpack.c.l.b16 %v39
    %v52 = vunpack.c.l.b16 %v40
    %v53 = vunpack.c.l.b16 %v41
    %v54 = vpack.c.b16 %v51, %v50
    %v55 = vpack.c.b16 %v53, %v52
    %vm58 = vcmask 261120
    %v60 = vsel %vm58, %v37, 0
    %62 = vmatpush.bf16.msra.mxu0 0
    %63 = vmatpush.bf16.msra.mxu0 0
    %64 = vmatpush.bf16.msra.mxu0 0
    %65 = vmatpush.bf16.msra.mxu0 0
    %66 = vmatpush.bf16.msra.mxu0 0
    %67 = vmatpush.bf16.msra.mxu0 0
    %68 = vmatpush.bf16.msra.mxu0 %v55
    %69 = vmatpush.bf16.msra.mxu0 %v54
    %70 = vmatmul.bf16.gmra.mxu0 %v60
    %v71 = vpop.f32.mrf.mxu0
    %v72 = vadd.f32 %v44, %v71
    %v73 = vpop.f32.mrf.mxu0
    %74 = vdwg.mxu0
    %v75 = vmax.f32 %v72, 0.0
    %v76 = vpack.c.bf16 %v75, %v75
    %v77 = vld [vmem:[%s3] sm:$0xf]
    %v78 = vld [vmem:[%s3 + $0x4] sm:$0xf]
    %v79 = vld [vmem:[%s3 + $0x8] sm:$0xf]
    %v80 = vld [vmem:[%s3 + $0xc] sm:$0xf]
    %v81 = vld [vmem:[%s3 + $0x10] sm:$0xf]
    %v82 = vld [vmem:[%s3 + $0x14] sm:$0xf]
    %v83 = vld [vmem:[%s3 + $0x18] sm:$0xf]
    %v84 = vld [vmem:[%s3 + $0x1c] sm:$0xf]
    %v85 = vld [vmem:[%s4] sm:$0x1]
    %v87 = vperm.slane %v85, 0
    %v97 = vunpack.c.l.b16 %v77
    %v98 = vunpack.c.l.b16 %v78
    %v99 = vunpack.c.l.b16 %v79
    %v100 = vunpack.c.l.b16 %v80
    %v101 = vunpack.c.l.b16 %v81
    %v102 = vunpack.c.l.b16 %v82
    %v103 = vunpack.c.l.b16 %v83
    %v104 = vunpack.c.l.b16 %v84
    %v105 = vpack.c.b16 %v98, %v97
    %v106 = vpack.c.b16 %v100, %v99
    %v107 = vpack.c.b16 %v102, %v101
    %v108 = vpack.c.b16 %v104, %v103
    %vm113 = vcmask 523264
    %v115 = vsel %vm113, %v76, 0
    %117 = vmatpush.bf16.msra.mxu0 0
    %118 = vmatpush.bf16.msra.mxu0 0
    %119 = vmatpush.bf16.msra.mxu0 0
    %120 = vmatpush.bf16.msra.mxu0 0
    %121 = vmatpush.bf16.msra.mxu0 %v108
    %122 = vmatpush.bf16.msra.mxu0 %v107
    %123 = vmatpush.bf16.msra.mxu0 %v106
    %124 = vmatpush.bf16.msra.mxu0 %v105
    %125 = vmatmul.bf16.gmra.mxu0 %v115
    %v126 = vpop.f32.mrf.mxu0
    %v127 = vadd.f32 %v87, %v126
    %v128 = vpop.f32.mrf.mxu0
    %129 = vdwg.mxu0
    %v130 = vmax.f32 %v127, 0.0
    %v131 = vpack.c.bf16 %v130, %v130
    %v132 = vld [vmem:[%s5] sm:$0xf]
    %v133 = vld [vmem:[%s5 + $0x4] sm:$0xf]
    %v134 = vld [vmem:[%s5 + $0x8] sm:$0xf]
    %v135 = vld [vmem:[%s5 + $0xc] sm:$0xf]
    %v136 = vld [vmem:[%s6] sm:$0x1]
    %v138 = vperm.slane %v136, 0
    %v144 = vunpack.c.l.b16 %v132
    %v145 = vunpack.c.l.b16 %v133
    %v146 = vunpack.c.l.b16 %v134
    %v147 = vunpack.c.l.b16 %v135
    %v148 = vpack.c.b16 %v145, %v144
    %v149 = vpack.c.b16 %v147, %v146
    %v153 = vsel %vm58, %v131, 0
    %155 = vmatpush.bf16.msra.mxu0 0
    %156 = vmatpush.bf16.msra.mxu0 0
    %157 = vmatpush.bf16.msra.mxu0 0
    %158 = vmatpush.bf16.msra.mxu0 0
    %159 = vmatpush.bf16.msra.mxu0 0
    %160 = vmatpush.bf16.msra.mxu0 0
    %161 = vmatpush.bf16.msra.mxu0 %v149
    %162 = vmatpush.bf16.msra.mxu0 %v148
    %163 = vmatmul.bf16.gmra.mxu0 %v153
    %v164 = vpop.f32.mrf.mxu0
    %v165 = vadd.f32 %v138, %v164
    %v166 = vpop.f32.mrf.mxu0
    %167 = vdwg.mxu0
    %v168 = vmax.f32 %v165, 0.0
    %v169 = vld [vmem:[%s7] sm:$0x1]
    %v170 = vld [vmem:[#allocation2] sm:$0x1]
    %172 = vset.pattern.permute.xlu0 0
    %173 = vperm.xlu0 %172, %v170
    %v174 = vpop.permute.xlu0 %173
    %v176 = vperm.slane %v174, 0
    %vm177 = vcmask 130048
    %v179 = vsel %vm177, %v169, 0
    %v182 = vsel %vm177, %v168, 0
    %184 = vmatpush.xpose.msra.mxu0 0.0
    %185 = vmatpush.xpose.msra.mxu0 0.0
    %186 = vmatpush.xpose.msra.mxu0 0.0
    %187 = vmatpush.xpose.msra.mxu0 0.0
    %188 = vmatpush.xpose.msra.mxu0 0.0
    %189 = vmatpush.xpose.msra.mxu0 0.0
    %190 = vmatpush.xpose.msra.mxu0 0.0
    %191 = vmatpush.xpose.msra.mxu0 0.0
    %192 = vmatpush.xpose.msra.mxu0 0.0
    %193 = vmatpush.xpose.msra.mxu0 0.0
    %194 = vmatpush.xpose.msra.mxu0 0.0
    %195 = vmatpush.xpose.msra.mxu0 0.0
    %196 = vmatpush.xpose.msra.mxu0 0.0
    %197 = vmatpush.xpose.msra.mxu0 0.0
    %198 = vmatpush.xpose.msra.mxu0 0.0
    %199 = vmatpush.xpose.msra.mxu0 %v182
    %200 = vmatmul.f32.gmra.mxu0 %v179
    %v201 = vpop.f32.mrf.mxu0
    %v202 = vadd.f32 %v176, %v201
    %203 = vdwg.mxu0
    %vm204 = vcmask 57344
    %205 = vst.msk [vmem:[#allocation3] sm:$0x1] %vm204, %v202
    // Predicated region
    $region38: #{tpu_custom_call.1} parent=1 // pred_check
      _
    $region39: #{tpu_custom_call.1} parent=1 // pred_check_branch
      %207 = sbr.rel (0) target = $region41
    $region40: #{tpu_custom_call.1} parent=1 // pred_region
      %209 = vsyncadd [#allocation4], 0
      %s211 = sshll.u32 [#allocation3], 4
      %s212 = int_to_ptr.vmem [resolvable:$true] %s211
      %s213 = sshll.u32 %s9, 4
      %s214 = int_to_ptr.hbm [resolvable:$true] %s213
      %216 = dma.vmem_to_hbm [thread:$0]  %s212, 16, %s214, [#allocation4]
    $region41: #{tpu_custom_call.1} parent=1 // pred_fallthru
      _
    // Predicated region
    $region42: #{tpu_custom_call.1} parent=1 // pred_check
      _
    $region43: #{tpu_custom_call.1} parent=1 // pred_check_branch
      %218 = sbr.rel (0) target = $region45
    $region44: #{tpu_custom_call.1} parent=1 // pred_region
      %220 = dma.done [#allocation4], 16
    $region45: #{tpu_custom_call.1} parent=1 // pred_fallthru
      _
    %221 = vsyncpa [#allocation4], 1

</llo_original>
